<compile_context>
chip_gen: v6e
topology: v6e:2x2x1
jax: 0.10.0
libtpu: 0.0.40
codegen_flags: <defaults>
</compile_context>

<pallas_src>
import functools

import jax
import jax.numpy as jnp
from jax import lax
from jax.experimental import pallas as pl
from jax.experimental.pallas import tpu as pltpu


def _mhtopk_kernel(t_ref, s_ref, wq_ref, wh_ref, wv_ref, wo_ref, o_ref,
                   *, num_heads, topk_eff):
    """Processes one batch tile of BT rows per grid step."""
    bt, d_in = t_ref.shape
    seq_len = s_ref.shape[1]
    attn_dim = wq_ref.shape[1]
    head_dim = attn_dim // num_heads

    inv_scale = 1.0 / (float(head_dim) ** 0.5)   # python float -> literal
    neg = -1e30                                  # python float -> literal

    target = t_ref[...]                                   # (BT, D_in)
    seq_flat = s_ref[...].reshape(bt * seq_len, d_in)     # (BT*L, D_in)

    # ---- projections: tall MXU matmuls over the whole batch tile ----------
    # 1/sqrt(hd) folded into Q (smaller tensor than the score stack).
    q = jnp.dot(target, wq_ref[...],
                preferred_element_type=jnp.float32) * inv_scale              # (BT, A)
    k = jnp.dot(seq_flat, wh_ref[...], preferred_element_type=jnp.float32)   # (BT*L, A)
    v = jnp.dot(seq_flat, wv_ref[...], preferred_element_type=jnp.float32)   # (BT*L, A)
    kr = k.reshape(bt, seq_len, attn_dim)
    vr = v.reshape(bt, seq_len, attn_dim)

    # ---- per-head scores via VPU mul + XLU reduce, stacked to (H, BT, L) ---
    # (avoids BT*H tiny M=1 MXU matmuls; lanes = L = the top-k reduce axis)
    score_rows = []
    for h in range(num_heads):
        lo = h * head_dim
        kh = kr[:, :, lo:lo + head_dim]                         # (BT, L, hd)
        qh = q[:, lo:lo + head_dim]                             # (BT, hd)
        score_rows.append(jnp.sum(kh * qh[:, None, :], axis=-1))  # (BT, L)
    scores = jnp.stack(score_rows, axis=0)                      # (H, BT, L)

    # ---- iterative top-k selection: one pass covers all heads & rows -------
    lane_ids = lax.broadcasted_iota(jnp.int32, (num_heads, bt, seq_len), 2)
    remaining = scores
    selected = None
    for _ in range(topk_eff):
        cur_max = jnp.max(remaining, axis=-1, keepdims=True)
        cur_idx = jnp.min(jnp.where(remaining == cur_max, lane_ids, seq_len),
                          axis=-1, keepdims=True)
        hit = lane_ids == cur_idx
        selected = hit if selected is None else jnp.logical_or(selected, hit)
        remaining = jnp.where(hit, neg, remaining)

    # ---- softmax over the selected (top-k) scores only ---------------------
    masked = jnp.where(selected, scores, neg)
    m = jnp.max(masked, axis=-1, keepdims=True)
    p = jnp.exp(masked - m)                                     # 0 for non-selected
    denom = jnp.sum(p, axis=-1, keepdims=True)
    p = p * pl.reciprocal(denom, approx=True)                   # (H, BT, L)

    # ---- weighted value sum per head, concat lane-dense, then W_o (MXU) ----
    outs = []
    for h in range(num_heads):
        lo = h * head_dim
        vh = vr[:, :, lo:lo + head_dim]                         # (BT, L, hd)
        ph = p[h][:, :, None]                                   # (BT, L, 1)
        outs.append(jnp.sum(vh * ph, axis=1))                   # (BT, hd)
    attn_out = jnp.concatenate(outs, axis=-1)                   # (BT, A)

    o_ref[...] = jnp.dot(attn_out, wo_ref[...],
                         preferred_element_type=jnp.float32).astype(o_ref.dtype)


def multihead_topk_attention(target_item, item_sequence, wq, wh, wv, wo,
                             *, num_heads, topk, block_b=None):
    B, L, D_in = item_sequence.shape
    A = wq.shape[1]
    assert A % num_heads == 0
    topk_eff = min(topk, L)

    # Batch tile: full batch in one step for small B, else 256-row tiles
    # (MXU-sized M; keeps double-buffered tiles well inside v7x's 64 MiB VMEM
    # for typical L/D_in, and leaves >=2 parallel steps to shard across the
    # two v7x TensorCores for large B).
    if block_b is None:
        block_b = B if B <= 256 else 256
    grid_b = -(-B // block_b)
    B_pad = grid_b * block_b
    if B_pad != B:
        pad = B_pad - B
        target_item = jnp.pad(target_item, ((0, pad), (0, 0)))
        item_sequence = jnp.pad(item_sequence, ((0, pad), (0, 0), (0, 0)))

    kernel = functools.partial(_mhtopk_kernel,
                               num_heads=num_heads, topk_eff=topk_eff)

    out = pl.pallas_call(
        kernel,
        out_shape=jax.ShapeDtypeStruct((B_pad, D_in), jnp.float32),
        grid=(grid_b,),
        in_specs=[
            pl.BlockSpec((block_b, D_in), lambda b: (b, 0)),        # target_item
            pl.BlockSpec((block_b, L, D_in), lambda b: (b, 0, 0)),  # item_sequence
            pl.BlockSpec((D_in, A), lambda b: (0, 0)),              # W_q (transposed)
            pl.BlockSpec((D_in, A), lambda b: (0, 0)),              # W_h (transposed)
            pl.BlockSpec((D_in, A), lambda b: (0, 0)),              # W_v (transposed)
            pl.BlockSpec((A, D_in), lambda b: (0, 0)),              # W_o (transposed)
        ],
        out_specs=pl.BlockSpec((block_b, D_in), lambda b: (b, 0)),
        compiler_params=pltpu.CompilerParams(
            dimension_semantics=("parallel",)),
    )(target_item, item_sequence, wq, wh, wv, wo)
    return out[:B]


def reference(target_item, item_sequence, wq, wh, wv, wo, *, num_heads, topk):
    """Pure-JAX replica of the PyTorch forward (Kc=0, mask=None, dropout=0)."""
    B, L, _ = item_sequence.shape
    A = wq.shape[1]
    hd = A // num_heads
    scale = hd ** 0.5
    q = target_item @ wq                                          # (B, A)
    k = item_sequence @ wh                                        # (B, L, A)
    v = item_sequence @ wv                                        # (B, L, A)
    q = q.reshape(B, 1, num_heads, hd).transpose(0, 2, 1, 3)      # (B,H,1,hd)
    k = k.reshape(B, L, num_heads, hd).transpose(0, 2, 1, 3)      # (B,H,L,hd)
    v = v.reshape(B, L, num_heads, hd).transpose(0, 2, 1, 3)      # (B,H,L,hd)
    scores = jnp.einsum('bhqd,bhkd->bhqk', q, k) / scale          # (B,H,1,L)
    kk = min(topk, L)
    top_scores, top_idx = lax.top_k(scores, kk)                   # (B,H,1,kk)
    attn = jax.nn.softmax(top_scores, axis=-1)
    top_v = jnp.take_along_axis(v, top_idx.swapaxes(-1, -2), axis=2)   # (B,H,kk,hd)
    out = jnp.einsum('bhqk,bhkd->bhqd', attn, top_v)              # (B,H,1,hd)
    out = out.transpose(0, 2, 1, 3).reshape(B, A)
    return out @ wo


if __name__ == "__main__":
    # Module hyper-parameters (Kc=0 => Kh_dim == input_dim, no cross features).
    B, L = 2, 8
    input_dim = 32
    attention_dim = 32
    num_heads = 2
    topk = 4            # topk < L so the selection actually prunes positions

    key = jax.random.PRNGKey(0)
    k1, k2, k3, k4, k5, k6 = jax.random.split(key, 6)

    target_item = jax.random.normal(k1, (B, input_dim), dtype=jnp.float32)
    item_sequence = jax.random.normal(k2, (B, L, input_dim), dtype=jnp.float32)

    # Deterministic weights, stored pre-transposed as (in_dim, out_dim).
    wq = 0.1 * jax.random.normal(k3, (input_dim, attention_dim), dtype=jnp.float32)
    wh = 0.1 * jax.random.normal(k4, (input_dim, attention_dim), dtype=jnp.float32)
    wv = 0.1 * jax.random.normal(k5, (input_dim, attention_dim), dtype=jnp.float32)
    wo = 0.1 * jax.random.normal(k6, (attention_dim, input_dim), dtype=jnp.float32)

    out = multihead_topk_attention(
        target_item, item_sequence, wq, wh, wv, wo,
        num_heads=num_heads, topk=topk)
    out = jax.block_until_ready(out)

    ref = reference(target_item, item_sequence, wq, wh, wv, wo,
                    num_heads=num_heads, topk=topk)
    assert out.shape == (B, input_dim)
    assert jnp.allclose(out, ref, atol=1e-3, rtol=1e-3), (
        f"max abs diff = {jnp.max(jnp.abs(out - ref))}")

    print("KERNEL_OK")
</pallas_src>

<mosaic_0001>
module attributes {stable_mosaic.version = 11 : i64} {
  func.func @_mhtopk_kernel(%arg0: i32, %arg1: memref<2x32xf32, #tpu.memory_space<vmem>>, %arg2: memref<2x8x32xf32, #tpu.memory_space<vmem>>, %arg3: memref<32x32xf32, #tpu.memory_space<vmem>>, %arg4: memref<32x32xf32, #tpu.memory_space<vmem>>, %arg5: memref<32x32xf32, #tpu.memory_space<vmem>>, %arg6: memref<32x32xf32, #tpu.memory_space<vmem>>, %arg7: memref<2x32xf32, #tpu.memory_space<vmem>>) attributes {dimension_semantics = [#tpu.dimension_semantics<parallel>], iteration_bounds = array<i64: 1>, scalar_prefetch = 0 : i64, scratch_operands = 0 : i64, tpu.core_type = #tpu.core_type<tc>, window_params = [{transform_indices = @transform_0, window_bounds = array<i64: 2, 32>}, {transform_indices = @transform_1, window_bounds = array<i64: 2, 8, 32>}, {pipeline_mode = #tpu.pipeline_mode<synchronous>, transform_indices = @transform_2, window_bounds = array<i64: 32, 32>}, {pipeline_mode = #tpu.pipeline_mode<synchronous>, transform_indices = @transform_3, window_bounds = array<i64: 32, 32>}, {pipeline_mode = #tpu.pipeline_mode<synchronous>, transform_indices = @transform_4, window_bounds = array<i64: 32, 32>}, {pipeline_mode = #tpu.pipeline_mode<synchronous>, transform_indices = @transform_5, window_bounds = array<i64: 32, 32>}, {transform_indices = @transform_6, window_bounds = array<i64: 2, 32>}]} {
    %c0 = arith.constant 0 : index
    %c0_0 = arith.constant 0 : index
    %0 = vector.load %arg1[%c0, %c0_0] : memref<2x32xf32, #tpu.memory_space<vmem>>, vector<2x32xf32>
    %c0_1 = arith.constant 0 : index
    %c0_2 = arith.constant 0 : index
    %c0_3 = arith.constant 0 : index
    %1 = vector.load %arg2[%c0_1, %c0_2, %c0_3] : memref<2x8x32xf32, #tpu.memory_space<vmem>>, vector<2x8x32xf32>
    %2 = vector.shape_cast %1 : vector<2x8x32xf32> to vector<16x32xf32>
    %c0_4 = arith.constant 0 : index
    %c0_5 = arith.constant 0 : index
    %3 = vector.load %arg3[%c0_4, %c0_5] : memref<32x32xf32, #tpu.memory_space<vmem>>, vector<32x32xf32>
    %cst = arith.constant dense<0.000000e+00> : vector<2x32xf32>
    %4 = tpu.matmul %0, %3, %cst {dimension_numbers = #tpu.dot_dimension_numbers<[1], [0], [0], [1], [0, 0, 1, 1], [], []>} : vector<2x32xf32>, vector<32x32xf32>, vector<2x32xf32> -> vector<2x32xf32>
    %cst_6 = arith.constant 2.500000e-01 : f32
    %5 = vector.broadcast %cst_6 : f32 to vector<2x32xf32>
    %6 = arith.mulf %4, %5 : vector<2x32xf32>
    %c0_7 = arith.constant 0 : index
    %c0_8 = arith.constant 0 : index
    %7 = vector.load %arg4[%c0_7, %c0_8] : memref<32x32xf32, #tpu.memory_space<vmem>>, vector<32x32xf32>
    %cst_9 = arith.constant dense<0.000000e+00> : vector<16x32xf32>
    %8 = tpu.matmul %2, %7, %cst_9 {dimension_numbers = #tpu.dot_dimension_numbers<[1], [0], [0], [1], [0, 0, 1, 1], [], []>} : vector<16x32xf32>, vector<32x32xf32>, vector<16x32xf32> -> vector<16x32xf32>
    %c0_10 = arith.constant 0 : index
    %c0_11 = arith.constant 0 : index
    %9 = vector.load %arg5[%c0_10, %c0_11] : memref<32x32xf32, #tpu.memory_space<vmem>>, vector<32x32xf32>
    %cst_12 = arith.constant dense<0.000000e+00> : vector<16x32xf32>
    %10 = tpu.matmul %2, %9, %cst_12 {dimension_numbers = #tpu.dot_dimension_numbers<[1], [0], [0], [1], [0, 0, 1, 1], [], []>} : vector<16x32xf32>, vector<32x32xf32>, vector<16x32xf32> -> vector<16x32xf32>
    %11 = vector.shape_cast %8 : vector<16x32xf32> to vector<2x8x32xf32>
    %12 = vector.shape_cast %10 : vector<16x32xf32> to vector<2x8x32xf32>
    %13 = vector.extract_strided_slice %11 {offsets = [0, 0, 0], sizes = [2, 8, 16], strides = [1, 1, 1]} : vector<2x8x32xf32> to vector<2x8x16xf32>
    %14 = vector.extract_strided_slice %6 {offsets = [0, 0], sizes = [2, 16], strides = [1, 1]} : vector<2x32xf32> to vector<2x16xf32>
    %15 = vector.shape_cast %14 : vector<2x16xf32> to vector<2x1x16xf32>
    %16 = vector.broadcast %15 : vector<2x1x16xf32> to vector<2x8x16xf32>
    %17 = arith.mulf %13, %16 : vector<2x8x16xf32>
    %cst_13 = arith.constant dense<0.000000e+00> : vector<2x8xf32>
    %18 = vector.multi_reduction <add>, %17, %cst_13 [2] : vector<2x8x16xf32> to vector<2x8xf32>
    %19 = vector.extract_strided_slice %11 {offsets = [0, 0, 16], sizes = [2, 8, 16], strides = [1, 1, 1]} : vector<2x8x32xf32> to vector<2x8x16xf32>
    %20 = vector.extract_strided_slice %6 {offsets = [0, 16], sizes = [2, 16], strides = [1, 1]} : vector<2x32xf32> to vector<2x16xf32>
    %21 = vector.shape_cast %20 : vector<2x16xf32> to vector<2x1x16xf32>
    %22 = vector.broadcast %21 : vector<2x1x16xf32> to vector<2x8x16xf32>
    %23 = arith.mulf %19, %22 : vector<2x8x16xf32>
    %cst_14 = arith.constant dense<0.000000e+00> : vector<2x8xf32>
    %24 = vector.multi_reduction <add>, %23, %cst_14 [2] : vector<2x8x16xf32> to vector<2x8xf32>
    %25 = vector.shape_cast %18 : vector<2x8xf32> to vector<1x2x8xf32>
    %26 = vector.shape_cast %24 : vector<2x8xf32> to vector<1x2x8xf32>
    %27 = tpu.concatenate %25, %26 in 0 : vector<1x2x8xf32>, vector<1x2x8xf32> -> vector<2x2x8xf32>
    %28 = tpu.iota {dimensions = array<i32: 2>} : vector<2x2x8xi32>
    %cst_15 = arith.constant dense<0xFF800000> : vector<2x2xf32>
    %29 = vector.multi_reduction <maximumf>, %27, %cst_15 [2] : vector<2x2x8xf32> to vector<2x2xf32>
    %30 = vector.shape_cast %29 : vector<2x2xf32> to vector<2x2x1xf32>
    %31 = vector.broadcast %30 : vector<2x2x1xf32> to vector<2x2x8xf32>
    %32 = arith.cmpf oeq, %27, %31 : vector<2x2x8xf32>
    %c8_i32 = arith.constant 8 : i32
    %33 = vector.broadcast %c8_i32 : i32 to vector<2x2x8xi32>
    %34 = arith.select %32, %28, %33 : vector<2x2x8xi1>, vector<2x2x8xi32>
    %cst_16 = arith.constant dense<2147483647> : vector<2x2xi32>
    %35 = vector.multi_reduction <minsi>, %34, %cst_16 [2] : vector<2x2x8xi32> to vector<2x2xi32>
    %36 = vector.shape_cast %35 : vector<2x2xi32> to vector<2x2x1xi32>
    %37 = vector.broadcast %36 : vector<2x2x1xi32> to vector<2x2x8xi32>
    %38 = arith.cmpi eq, %28, %37 : vector<2x2x8xi32>
    %cst_17 = arith.constant -1.000000e+30 : f32
    %39 = vector.broadcast %cst_17 : f32 to vector<2x2x8xf32>
    %40 = arith.select %38, %39, %27 : vector<2x2x8xi1>, vector<2x2x8xf32>
    %cst_18 = arith.constant dense<0xFF800000> : vector<2x2xf32>
    %41 = vector.multi_reduction <maximumf>, %40, %cst_18 [2] : vector<2x2x8xf32> to vector<2x2xf32>
    %42 = vector.shape_cast %41 : vector<2x2xf32> to vector<2x2x1xf32>
    %43 = vector.broadcast %42 : vector<2x2x1xf32> to vector<2x2x8xf32>
    %44 = arith.cmpf oeq, %40, %43 : vector<2x2x8xf32>
    %c8_i32_19 = arith.constant 8 : i32
    %45 = vector.broadcast %c8_i32_19 : i32 to vector<2x2x8xi32>
    %46 = arith.select %44, %28, %45 : vector<2x2x8xi1>, vector<2x2x8xi32>
    %cst_20 = arith.constant dense<2147483647> : vector<2x2xi32>
    %47 = vector.multi_reduction <minsi>, %46, %cst_20 [2] : vector<2x2x8xi32> to vector<2x2xi32>
    %48 = vector.shape_cast %47 : vector<2x2xi32> to vector<2x2x1xi32>
    %49 = vector.broadcast %48 : vector<2x2x1xi32> to vector<2x2x8xi32>
    %50 = arith.cmpi eq, %28, %49 : vector<2x2x8xi32>
    %51 = arith.ori %38, %50 : vector<2x2x8xi1>
    %cst_21 = arith.constant -1.000000e+30 : f32
    %52 = vector.broadcast %cst_21 : f32 to vector<2x2x8xf32>
    %53 = arith.select %50, %52, %40 : vector<2x2x8xi1>, vector<2x2x8xf32>
    %cst_22 = arith.constant dense<0xFF800000> : vector<2x2xf32>
    %54 = vector.multi_reduction <maximumf>, %53, %cst_22 [2] : vector<2x2x8xf32> to vector<2x2xf32>
    %55 = vector.shape_cast %54 : vector<2x2xf32> to vector<2x2x1xf32>
    %56 = vector.broadcast %55 : vector<2x2x1xf32> to vector<2x2x8xf32>
    %57 = arith.cmpf oeq, %53, %56 : vector<2x2x8xf32>
    %c8_i32_23 = arith.constant 8 : i32
    %58 = vector.broadcast %c8_i32_23 : i32 to vector<2x2x8xi32>
    %59 = arith.select %57, %28, %58 : vector<2x2x8xi1>, vector<2x2x8xi32>
    %cst_24 = arith.constant dense<2147483647> : vector<2x2xi32>
    %60 = vector.multi_reduction <minsi>, %59, %cst_24 [2] : vector<2x2x8xi32> to vector<2x2xi32>
    %61 = vector.shape_cast %60 : vector<2x2xi32> to vector<2x2x1xi32>
    %62 = vector.broadcast %61 : vector<2x2x1xi32> to vector<2x2x8xi32>
    %63 = arith.cmpi eq, %28, %62 : vector<2x2x8xi32>
    %64 = arith.ori %51, %63 : vector<2x2x8xi1>
    %cst_25 = arith.constant -1.000000e+30 : f32
    %65 = vector.broadcast %cst_25 : f32 to vector<2x2x8xf32>
    %66 = arith.select %63, %65, %53 : vector<2x2x8xi1>, vector<2x2x8xf32>
    %cst_26 = arith.constant dense<0xFF800000> : vector<2x2xf32>
    %67 = vector.multi_reduction <maximumf>, %66, %cst_26 [2] : vector<2x2x8xf32> to vector<2x2xf32>
    %68 = vector.shape_cast %67 : vector<2x2xf32> to vector<2x2x1xf32>
    %69 = vector.broadcast %68 : vector<2x2x1xf32> to vector<2x2x8xf32>
    %70 = arith.cmpf oeq, %66, %69 : vector<2x2x8xf32>
    %c8_i32_27 = arith.constant 8 : i32
    %71 = vector.broadcast %c8_i32_27 : i32 to vector<2x2x8xi32>
    %72 = arith.select %70, %28, %71 : vector<2x2x8xi1>, vector<2x2x8xi32>
    %cst_28 = arith.constant dense<2147483647> : vector<2x2xi32>
    %73 = vector.multi_reduction <minsi>, %72, %cst_28 [2] : vector<2x2x8xi32> to vector<2x2xi32>
    %74 = vector.shape_cast %73 : vector<2x2xi32> to vector<2x2x1xi32>
    %75 = vector.broadcast %74 : vector<2x2x1xi32> to vector<2x2x8xi32>
    %76 = arith.cmpi eq, %28, %75 : vector<2x2x8xi32>
    %77 = arith.ori %64, %76 : vector<2x2x8xi1>
    %cst_29 = arith.constant -1.000000e+30 : f32
    %78 = vector.broadcast %cst_29 : f32 to vector<2x2x8xf32>
    %79 = arith.select %77, %27, %78 : vector<2x2x8xi1>, vector<2x2x8xf32>
    %cst_30 = arith.constant dense<0xFF800000> : vector<2x2xf32>
    %80 = vector.multi_reduction <maximumf>, %79, %cst_30 [2] : vector<2x2x8xf32> to vector<2x2xf32>
    %81 = vector.shape_cast %80 : vector<2x2xf32> to vector<2x2x1xf32>
    %82 = vector.broadcast %81 : vector<2x2x1xf32> to vector<2x2x8xf32>
    %83 = arith.subf %79, %82 : vector<2x2x8xf32>
    %84 = math.exp %83 : vector<2x2x8xf32>
    %cst_31 = arith.constant dense<0.000000e+00> : vector<2x2xf32>
    %85 = vector.multi_reduction <add>, %84, %cst_31 [2] : vector<2x2x8xf32> to vector<2x2xf32>
    %86 = vector.shape_cast %85 : vector<2x2xf32> to vector<2x2x1xf32>
    %87 = tpu.reciprocal %86 {approx = true} : vector<2x2x1xf32> -> vector<2x2x1xf32>
    %88 = vector.broadcast %87 : vector<2x2x1xf32> to vector<2x2x8xf32>
    %89 = arith.mulf %84, %88 : vector<2x2x8xf32>
    %90 = vector.extract_strided_slice %12 {offsets = [0, 0, 0], sizes = [2, 8, 16], strides = [1, 1, 1]} : vector<2x8x32xf32> to vector<2x8x16xf32>
    %91 = vector.extract_strided_slice %89 {offsets = [0, 0, 0], sizes = [1, 2, 8], strides = [1, 1, 1]} : vector<2x2x8xf32> to vector<1x2x8xf32>
    %92 = vector.shape_cast %91 : vector<1x2x8xf32> to vector<2x8xf32>
    %93 = vector.shape_cast %92 : vector<2x8xf32> to vector<2x8x1xf32>
    %94 = vector.broadcast %93 : vector<2x8x1xf32> to vector<2x8x16xf32>
    %95 = arith.mulf %90, %94 : vector<2x8x16xf32>
    %cst_32 = arith.constant dense<0.000000e+00> : vector<2x16xf32>
    %96 = vector.multi_reduction <add>, %95, %cst_32 [1] : vector<2x8x16xf32> to vector<2x16xf32>
    %97 = vector.extract_strided_slice %12 {offsets = [0, 0, 16], sizes = [2, 8, 16], strides = [1, 1, 1]} : vector<2x8x32xf32> to vector<2x8x16xf32>
    %98 = vector.extract_strided_slice %89 {offsets = [1, 0, 0], sizes = [1, 2, 8], strides = [1, 1, 1]} : vector<2x2x8xf32> to vector<1x2x8xf32>
    %99 = vector.shape_cast %98 : vector<1x2x8xf32> to vector<2x8xf32>
    %100 = vector.shape_cast %99 : vector<2x8xf32> to vector<2x8x1xf32>
    %101 = vector.broadcast %100 : vector<2x8x1xf32> to vector<2x8x16xf32>
    %102 = arith.mulf %97, %101 : vector<2x8x16xf32>
    %cst_33 = arith.constant dense<0.000000e+00> : vector<2x16xf32>
    %103 = vector.multi_reduction <add>, %102, %cst_33 [1] : vector<2x8x16xf32> to vector<2x16xf32>
    %104 = tpu.concatenate %96, %103 in 1 : vector<2x16xf32>, vector<2x16xf32> -> vector<2x32xf32>
    %c0_34 = arith.constant 0 : index
    %c0_35 = arith.constant 0 : index
    %105 = vector.load %arg6[%c0_34, %c0_35] : memref<32x32xf32, #tpu.memory_space<vmem>>, vector<32x32xf32>
    %cst_36 = arith.constant dense<0.000000e+00> : vector<2x32xf32>
    %106 = tpu.matmul %104, %105, %cst_36 {dimension_numbers = #tpu.dot_dimension_numbers<[1], [0], [0], [1], [0, 0, 1, 1], [], []>} : vector<2x32xf32>, vector<32x32xf32>, vector<2x32xf32> -> vector<2x32xf32>
    %c0_37 = arith.constant 0 : index
    %c0_38 = arith.constant 0 : index
    %107 = vector.load %arg7[%c0_37, %c0_38] : memref<2x32xf32, #tpu.memory_space<vmem>>, vector<2x32xf32>
    tpu.vector_store %arg7[%c0_37, %c0_38], %106 {strides = array<i32>} : memref<2x32xf32, #tpu.memory_space<vmem>>, vector<2x32xf32>,
    return
  }
  func.func @transform_0(%arg0: i32) -> (i32, i32) {
    %c0_i32 = arith.constant 0 : i32
    %c0_i32_0 = arith.constant 0 : i32
    return %arg0, %c0_i32 : i32, i32
  }
  func.func @transform_1(%arg0: i32) -> (i32, i32, i32) {
    %c0_i32 = arith.constant 0 : i32
    %c0_i32_0 = arith.constant 0 : i32
    %c0_i32_1 = arith.constant 0 : i32
    return %arg0, %c0_i32, %c0_i32_0 : i32, i32, i32
  }
  func.func @transform_2(%arg0: i32) -> (i32, i32) {
    %c0_i32 = arith.constant 0 : i32
    %c0_i32_0 = arith.constant 0 : i32
    %c0_i32_1 = arith.constant 0 : i32
    return %c0_i32, %c0_i32_0 : i32, i32
  }
  func.func @transform_3(%arg0: i32) -> (i32, i32) {
    %c0_i32 = arith.constant 0 : i32
    %c0_i32_0 = arith.constant 0 : i32
    %c0_i32_1 = arith.constant 0 : i32
    return %c0_i32, %c0_i32_0 : i32, i32
  }
  func.func @transform_4(%arg0: i32) -> (i32, i32) {
    %c0_i32 = arith.constant 0 : i32
    %c0_i32_0 = arith.constant 0 : i32
    %c0_i32_1 = arith.constant 0 : i32
    return %c0_i32, %c0_i32_0 : i32, i32
  }
  func.func @transform_5(%arg0: i32) -> (i32, i32) {
    %c0_i32 = arith.constant 0 : i32
    %c0_i32_0 = arith.constant 0 : i32
    %c0_i32_1 = arith.constant 0 : i32
    return %c0_i32, %c0_i32_0 : i32, i32
  }
  func.func @transform_6(%arg0: i32) -> (i32, i32) {
    %c0_i32 = arith.constant 0 : i32
    %c0_i32_0 = arith.constant 0 : i32
    return %arg0, %c0_i32 : i32, i32
  }
}

</mosaic_0001>

<llo_original>
// kernel: tpu_custom_call.1
$region0: #{tpu_custom_call.1}
  #allocation0 [shape = 'u32[]', space=smem, size = 0x4, offset = 0x4, fixed_abs, tag = 'smem constant byte address 0x4 - core index']
  #allocation1 [shape = 'u32[144,128]{1,0:T(1,128)}', space=vmem, size = 0x12000, scoped, tag = 'internal scratch']
  %s0 = inlined_call_operand.hbm [shape: f32[2,32], index: 0, kind: input, shape index: {}]
  %s1 = inlined_call_operand.hbm [shape: f32[2,8,32], index: 1, kind: input, shape index: {}]
  %s2 = inlined_call_operand.hbm [shape: f32[32,32], index: 2, kind: input, shape index: {}]
  %s3 = inlined_call_operand.hbm [shape: f32[32,32], index: 3, kind: input, shape index: {}]
  %s4 = inlined_call_operand.hbm [shape: f32[32,32], index: 4, kind: input, shape index: {}]
  %s5 = inlined_call_operand.hbm [shape: f32[32,32], index: 5, kind: input, shape index: {}]
  %s6 = inlined_call_operand.hbm [shape: f32[2,32], index: 6, kind: output, shape index: {}]
  %s7 = sld [smem:[#allocation0]]
  $region58: #{tpu_custom_call.1} parent=0
    _
  %s9 = ssub.s32 1, %s7
  %s10 = scalar_select 0, %s9, %s7
  $region1: #{tpu_custom_call.1} parent=0
    #allocation2 [shape = 'u8[1024]{0}', space=vmem, size = 0x400, scoped, tag = 'input window, operand 0, single buffered']
    #allocation3 [shape = 's32[1]{0}', space=sflag, size = 0x4, scoped, tag = 'scoped memory for tpu_custom_call.1']
    #allocation4 [shape = 's32[1]{0}', space=sflag, size = 0x4, scoped, tag = 'scoped memory for tpu_custom_call.1']
    #allocation5 [shape = 'u8[8192]{0}', space=vmem, size = 0x2000, scoped, tag = 'input window, operand 1, single buffered']
    #allocation6 [shape = 's32[1]{0}', space=sflag, size = 0x4, scoped, tag = 'scoped memory for tpu_custom_call.1']
    #allocation7 [shape = 'u8[16384]{0}', space=vmem, size = 0x4000, scoped, tag = 'input window, operand 2, single buffered']
    #allocation8 [shape = 'u8[16384]{0}', space=vmem, size = 0x4000, scoped, tag = 'input window, operand 3, single buffered']
    #allocation9 [shape = 's32[1]{0}', space=sflag, size = 0x4, scoped, tag = 'scoped memory for tpu_custom_call.1']
    #allocation10 [shape = 'u8[16384]{0}', space=vmem, size = 0x4000, scoped, tag = 'input window, operand 4, single buffered']
    #allocation11 [shape = 'u8[16384]{0}', space=vmem, size = 0x4000, scoped, tag = 'input window, operand 5, single buffered']
    #allocation12 [shape = 's32[1]{0}', space=sflag, size = 0x4, scoped, tag = 'scoped memory for tpu_custom_call.1']
    #allocation13 [shape = 'u8[1024]{0}', space=vmem, size = 0x400, scoped, tag = 'output window, operand 0, single buffered']
    %11 = vsyncpa [#allocation3], 0
    %12 = vsyncpa [#allocation6], 0
    %13 = vsyncpa [#allocation9], 0
    %14 = vsyncpa [#allocation12], 0
    %15 = vsyncpa [#allocation4], 0
    // Predicated region
    $region2: #{tpu_custom_call.1} parent=1 // pred_check
      _
    $region3: #{tpu_custom_call.1} parent=1 // pred_check_branch
      %17 = sbr.rel (0) target = $region5
    $region4: #{tpu_custom_call.1} parent=1 // pred_region
      %s19 = ssub.s32 32, 32
      %20 = vsyncadd [#allocation3], %s19
      %s22 = sshll.u32 [#allocation2], 4
      %s23 = int_to_ptr.vmem [resolvable:$true] %s22
      %25 = dma.hbm_to_vmem [thread:$0]  %s0, 32, %s23, [#allocation3]
    $region5: #{tpu_custom_call.1} parent=1 // pred_fallthru
      _
    // Predicated region
    $region6: #{tpu_custom_call.1} parent=1 // pred_check
      _
    $region7: #{tpu_custom_call.1} parent=1 // pred_check_branch
      %27 = sbr.rel (0) target = $region9
    $region8: #{tpu_custom_call.1} parent=1 // pred_region
      %s29 = ssub.s32 256, 256
      %30 = vsyncadd [#allocation6], %s29
      %s31 = sshll.u32 [#allocation5], 4
      %s32 = int_to_ptr.vmem [resolvable:$true] %s31
      %37 = dma.hbm_to_vmem [thread:$0]  %s1, 256, %s32, [#allocation6], 128, 128, 8
    $region9: #{tpu_custom_call.1} parent=1 // pred_fallthru
      _
    // Predicated region
    $region10: #{tpu_custom_call.1} parent=1 // pred_check
      _
    $region11: #{tpu_custom_call.1} parent=1 // pred_check_branch
      %39 = sbr.rel (0) target = $region13
    $region12: #{tpu_custom_call.1} parent=1 // pred_region
      %s41 = ssub.s32 512, 512
      %42 = vsyncadd [#allocation6], %s41
      %s43 = sshll.u32 [#allocation7], 4
      %s44 = int_to_ptr.vmem [resolvable:$true] %s43
      %49 = dma.hbm_to_vmem [thread:$0]  %s2, 512, %s44, [#allocation6], 128, 128, 8
    $region13: #{tpu_custom_call.1} parent=1 // pred_fallthru
      _
    // Predicated region
    $region14: #{tpu_custom_call.1} parent=1 // pred_check
      _
    $region15: #{tpu_custom_call.1} parent=1 // pred_check_branch
      %51 = sbr.rel (0) target = $region17
    $region16: #{tpu_custom_call.1} parent=1 // pred_region
      %s53 = ssub.s32 512, 512
      %54 = vsyncadd [#allocation9], %s53
      %s55 = sshll.u32 [#allocation8], 4
      %s56 = int_to_ptr.vmem [resolvable:$true] %s55
      %61 = dma.hbm_to_vmem [thread:$0]  %s3, 512, %s56, [#allocation9], 128, 128, 8
    $region17: #{tpu_custom_call.1} parent=1 // pred_fallthru
      _
    // Predicated region
    $region18: #{tpu_custom_call.1} parent=1 // pred_check
      _
    $region19: #{tpu_custom_call.1} parent=1 // pred_check_branch
      %63 = sbr.rel (0) target = $region21
    $region20: #{tpu_custom_call.1} parent=1 // pred_region
      %s65 = ssub.s32 512, 512
      %66 = vsyncadd [#allocation9], %s65
      %s67 = sshll.u32 [#allocation10], 4
      %s68 = int_to_ptr.vmem [resolvable:$true] %s67
      %73 = dma.hbm_to_vmem [thread:$0]  %s4, 512, %s68, [#allocation9], 128, 128, 8
    $region21: #{tpu_custom_call.1} parent=1 // pred_fallthru
      _
    // Predicated region
    $region22: #{tpu_custom_call.1} parent=1 // pred_check
      _
    $region23: #{tpu_custom_call.1} parent=1 // pred_check_branch
      %75 = sbr.rel (0) target = $region25
    $region24: #{tpu_custom_call.1} parent=1 // pred_region
      %s77 = ssub.s32 512, 512
      %78 = vsyncadd [#allocation12], %s77
      %s79 = sshll.u32 [#allocation11], 4
      %s80 = int_to_ptr.vmem [resolvable:$true] %s79
      %85 = dma.hbm_to_vmem [thread:$0]  %s5, 512, %s80, [#allocation12], 128, 128, 8
    $region25: #{tpu_custom_call.1} parent=1 // pred_fallthru
      _
    // Predicated region
    $region26: #{tpu_custom_call.1} parent=1 // pred_check
      _
    $region27: #{tpu_custom_call.1} parent=1 // pred_check_branch
      %87 = sbr.rel (0) target = $region29
    $region28: #{tpu_custom_call.1} parent=1 // pred_region
      %88 = dma.done [#allocation3], 32
    $region29: #{tpu_custom_call.1} parent=1 // pred_fallthru
      _
    // Predicated region
    $region30: #{tpu_custom_call.1} parent=1 // pred_check
      _
    $region31: #{tpu_custom_call.1} parent=1 // pred_check_branch
      %90 = sbr.rel (0) target = $region33
    $region32: #{tpu_custom_call.1} parent=1 // pred_region
      %91 = dma.done [#allocation6], 256
    $region33: #{tpu_custom_call.1} parent=1 // pred_fallthru
      _
    // Predicated region
    $region34: #{tpu_custom_call.1} parent=1 // pred_check
      _
    $region35: #{tpu_custom_call.1} parent=1 // pred_check_branch
      %93 = sbr.rel (0) target = $region37
    $region36: #{tpu_custom_call.1} parent=1 // pred_region
      %94 = dma.done [#allocation6], 512
    $region37: #{tpu_custom_call.1} parent=1 // pred_fallthru
      _
    // Predicated region
    $region38: #{tpu_custom_call.1} parent=1 // pred_check
      _
    $region39: #{tpu_custom_call.1} parent=1 // pred_check_branch
      %96 = sbr.rel (0) target = $region41
    $region40: #{tpu_custom_call.1} parent=1 // pred_region
      %97 = dma.done [#allocation9], 512
    $region41: #{tpu_custom_call.1} parent=1 // pred_fallthru
      _
    // Predicated region
    $region42: #{tpu_custom_call.1} parent=1 // pred_check
      _
    $region43: #{tpu_custom_call.1} parent=1 // pred_check_branch
      %99 = sbr.rel (0) target = $region45
    $region44: #{tpu_custom_call.1} parent=1 // pred_region
      %100 = dma.done [#allocation9], 512
    $region45: #{tpu_custom_call.1} parent=1 // pred_fallthru
      _
    // Predicated region
    $region46: #{tpu_custom_call.1} parent=1 // pred_check
      _
    $region47: #{tpu_custom_call.1} parent=1 // pred_check_branch
      %102 = sbr.rel (0) target = $region49
    $region48: #{tpu_custom_call.1} parent=1 // pred_region
      %103 = dma.done [#allocation12], 512
    $region49: #{tpu_custom_call.1} parent=1 // pred_fallthru
      _
    %v104 = vld [vmem:[#allocation2] sm:$0x3]
    %v105 = vld [vmem:[#allocation5] sm:$0xff]
    %v106 = vld [vmem:[#allocation5 + $0x8] sm:$0xff]
    %v107 = vld [vmem:[#allocation7] sm:$0xff]
    %v108 = vld [vmem:[#allocation7 + $0x8] sm:$0xff]
    %v109 = vld [vmem:[#allocation7 + $0x10] sm:$0xff]
    %v110 = vld [vmem:[#allocation7 + $0x18] sm:$0xff]
    %vm111 = vcmask 261120
    %v113 = vsel %vm111, %v104, 0
    %115 = vmatprep.subr.mxu0 0.0
    %116 = vmatpush1.msra.mxu0 0.0
    %117 = vmatprep.subr.mxu0 0.0
    %118 = vmatpush1.msra.mxu0 0.0
    %119 = vmatprep.subr.mxu0 0.0
    %120 = vmatpush1.msra.mxu0 0.0
    %121 = vmatprep.subr.mxu0 0.0
    %122 = vmatpush1.msra.mxu0 0.0
    %123 = vmatprep.subr.mxu0 0.0
    %124 = vmatpush1.msra.mxu0 0.0
    %125 = vmatprep.subr.mxu0 0.0
    %126 = vmatpush1.msra.mxu0 0.0
    %127 = vmatprep.subr.mxu0 0.0
    %128 = vmatpush1.msra.mxu0 0.0
    %129 = vmatprep.subr.mxu0 0.0
    %130 = vmatpush1.msra.mxu0 0.0
    %131 = vmatprep.subr.mxu0 0.0
    %132 = vmatpush1.msra.mxu0 0.0
    %133 = vmatprep.subr.mxu0 0.0
    %134 = vmatpush1.msra.mxu0 0.0
    %135 = vmatprep.subr.mxu0 0.0
    %136 = vmatpush1.msra.mxu0 0.0
    %137 = vmatprep.subr.mxu0 0.0
    %138 = vmatpush1.msra.mxu0 0.0
    %139 = vmatprep.subr.mxu0 0.0
    %140 = vmatpush1.msra.mxu0 %v110
    %141 = vmatprep.subr.mxu0 0.0
    %142 = vmatpush1.msra.mxu0 %v109
    %143 = vmatprep.subr.mxu0 0.0
    %144 = vmatpush1.msra.mxu0 %v108
    %145 = vmatprep.subr.mxu0 0.0
    %146 = vmatpush1.msra.mxu0 %v107
    %147 = vmatprep.subr.mxu0 0.0
    %148 = vmatpush2.msra.mxu0 0.0
    %149 = vmatprep.subr.mxu0 0.0
    %150 = vmatpush2.msra.mxu0 0.0
    %151 = vmatprep.subr.mxu0 0.0
    %152 = vmatpush2.msra.mxu0 0.0
    %153 = vmatprep.subr.mxu0 0.0
    %154 = vmatpush2.msra.mxu0 0.0
    %155 = vmatprep.subr.mxu0 0.0
    %156 = vmatpush2.msra.mxu0 0.0
    %157 = vmatprep.subr.mxu0 0.0
    %158 = vmatpush2.msra.mxu0 0.0
    %159 = vmatprep.subr.mxu0 0.0
    %160 = vmatpush2.msra.mxu0 0.0
    %161 = vmatprep.subr.mxu0 0.0
    %162 = vmatpush2.msra.mxu0 0.0
    %163 = vmatprep.subr.mxu0 0.0
    %164 = vmatpush2.msra.mxu0 0.0
    %165 = vmatprep.subr.mxu0 0.0
    %166 = vmatpush2.msra.mxu0 0.0
    %167 = vmatprep.subr.mxu0 0.0
    %168 = vmatpush2.msra.mxu0 0.0
    %169 = vmatprep.subr.mxu0 0.0
    %170 = vmatpush2.msra.mxu0 0.0
    %171 = vmatprep.subr.mxu0 0.0
    %172 = vmatpush2.msra.mxu0 0.0
    %173 = vmatprep.subr.mxu0 0.0
    %174 = vmatpush2.msra.mxu0 0.0
    %175 = vmatprep.subr.mxu0 0.0
    %176 = vmatpush2.msra.mxu0 0.0
    %177 = vmatprep.subr.mxu0 0.0
    %178 = vmatpush2.msra.mxu0 0.0
    %179 = vmatprep.mubr.f32.mxu0 0.0
    %180 = vmatmul.mubr.f32.gmra.mxu0 %v113
    %v181 = vpop.f32.mrf.mxu0
    %v182 = vadd.f32 0.0, %v181
    %v183 = vpop.f32.mrf.mxu0
    %184 = vdwg.mxu0
    %v185 = vmul.f32 %v182, 0.25
    %v186 = vld [vmem:[#allocation8] sm:$0xff]
    %v187 = vld [vmem:[#allocation8 + $0x8] sm:$0xff]
    %v188 = vld [vmem:[#allocation8 + $0x10] sm:$0xff]
    %v189 = vld [vmem:[#allocation8 + $0x18] sm:$0xff]
    %v191 = vsel %vm111, %v105, 0
    %v194 = vsel %vm111, %v106, 0
    %196 = vmatprep.subr.mxu0 0.0
    %197 = vmatpush1.msra.mxu0 0.0
    %198 = vmatprep.subr.mxu0 0.0
    %199 = vmatpush1.msra.mxu0 0.0
    %200 = vmatprep.subr.mxu0 0.0
    %201 = vmatpush1.msra.mxu0 0.0
    %202 = vmatprep.subr.mxu0 0.0
    %203 = vmatpush1.msra.mxu0 0.0
    %204 = vmatprep.subr.mxu0 0.0
    %205 = vmatpush1.msra.mxu0 0.0
    %206 = vmatprep.subr.mxu0 0.0
    %207 = vmatpush1.msra.mxu0 0.0
    %208 = vmatprep.subr.mxu0 0.0
    %209 = vmatpush1.msra.mxu0 0.0
    %210 = vmatprep.subr.mxu0 0.0
    %211 = vmatpush1.msra.mxu0 0.0
    %212 = vmatprep.subr.mxu0 0.0
    %213 = vmatpush1.msra.mxu0 0.0
    %214 = vmatprep.subr.mxu0 0.0
    %215 = vmatpush1.msra.mxu0 0.0
    %216 = vmatprep.subr.mxu0 0.0
    %217 = vmatpush1.msra.mxu0 0.0
    %218 = vmatprep.subr.mxu0 0.0
    %219 = vmatpush1.msra.mxu0 0.0
    %220 = vmatprep.subr.mxu0 0.0
    %221 = vmatpush1.msra.mxu0 %v189
    %222 = vmatprep.subr.mxu0 0.0
    %223 = vmatpush1.msra.mxu0 %v188
    %224 = vmatprep.subr.mxu0 0.0
    %225 = vmatpush1.msra.mxu0 %v187
    %226 = vmatprep.subr.mxu0 0.0
    %227 = vmatpush1.msra.mxu0 %v186
    %228 = vmatprep.subr.mxu0 0.0
    %229 = vmatpush2.msra.mxu0 0.0
    %230 = vmatprep.subr.mxu0 0.0
    %231 = vmatpush2.msra.mxu0 0.0
    %232 = vmatprep.subr.mxu0 0.0
    %233 = vmatpush2.msra.mxu0 0.0
    %234 = vmatprep.subr.mxu0 0.0
    %235 = vmatpush2.msra.mxu0 0.0
    %236 = vmatprep.subr.mxu0 0.0
    %237 = vmatpush2.msra.mxu0 0.0
    %238 = vmatprep.subr.mxu0 0.0
    %239 = vmatpush2.msra.mxu0 0.0
    %240 = vmatprep.subr.mxu0 0.0
    %241 = vmatpush2.msra.mxu0 0.0
    %242 = vmatprep.subr.mxu0 0.0
    %243 = vmatpush2.msra.mxu0 0.0
    %244 = vmatprep.subr.mxu0 0.0
    %245 = vmatpush2.msra.mxu0 0.0
    %246 = vmatprep.subr.mxu0 0.0
    %247 = vmatpush2.msra.mxu0 0.0
    %248 = vmatprep.subr.mxu0 0.0
    %249 = vmatpush2.msra.mxu0 0.0
    %250 = vmatprep.subr.mxu0 0.0
    %251 = vmatpush2.msra.mxu0 0.0
    %252 = vmatprep.subr.mxu0 0.0
    %253 = vmatpush2.msra.mxu0 0.0
    %254 = vmatprep.subr.mxu0 0.0
    %255 = vmatpush2.msra.mxu0 0.0
    %256 = vmatprep.subr.mxu0 0.0
    %257 = vmatpush2.msra.mxu0 0.0
    %258 = vmatprep.subr.mxu0 0.0
    %259 = vmatpush2.msra.mxu0 0.0
    %260 = vmatprep.mubr.f32.mxu0 0.0
    %261 = vmatmul.mubr.f32.gmra.mxu0 %v191
    %v262 = vpop.f32.mrf.mxu0
    %v263 = vadd.f32 0.0, %v262
    %v264 = vpop.f32.mrf.mxu0
    %265 = vmatprep.mubr.f32.mxu0 0.0
    %266 = vmatmul.mubr.f32.gmra.mxu0 %v194
    %v267 = vpop.f32.mrf.mxu0
    %v268 = vadd.f32 0.0, %v267
    %v269 = vpop.f32.mrf.mxu0
    %270 = vdwg.mxu0
    %v271 = vld [vmem:[#allocation10] sm:$0xff]
    %v272 = vld [vmem:[#allocation10 + $0x8] sm:$0xff]
    %v273 = vld [vmem:[#allocation10 + $0x10] sm:$0xff]
    %v274 = vld [vmem:[#allocation10 + $0x18] sm:$0xff]
    %275 = vmatprep.subr.mxu0 0.0
    %276 = vmatpush1.msra.mxu0 0.0
    %277 = vmatprep.subr.mxu0 0.0
    %278 = vmatpush1.msra.mxu0 0.0
    %279 = vmatprep.subr.mxu0 0.0
    %280 = vmatpush1.msra.mxu0 0.0
    %281 = vmatprep.subr.mxu0 0.0
    %282 = vmatpush1.msra.mxu0 0.0
    %283 = vmatprep.subr.mxu0 0.0
    %284 = vmatpush1.msra.mxu0 0.0
    %285 = vmatprep.subr.mxu0 0.0
    %286 = vmatpush1.msra.mxu0 0.0
    %287 = vmatprep.subr.mxu0 0.0
    %288 = vmatpush1.msra.mxu0 0.0
    %289 = vmatprep.subr.mxu0 0.0
    %290 = vmatpush1.msra.mxu0 0.0
    %291 = vmatprep.subr.mxu0 0.0
    %292 = vmatpush1.msra.mxu0 0.0
    %293 = vmatprep.subr.mxu0 0.0
    %294 = vmatpush1.msra.mxu0 0.0
    %295 = vmatprep.subr.mxu0 0.0
    %296 = vmatpush1.msra.mxu0 0.0
    %297 = vmatprep.subr.mxu0 0.0
    %298 = vmatpush1.msra.mxu0 0.0
    %299 = vmatprep.subr.mxu0 0.0
    %300 = vmatpush1.msra.mxu0 %v274
    %301 = vmatprep.subr.mxu0 0.0
    %302 = vmatpush1.msra.mxu0 %v273
    %303 = vmatprep.subr.mxu0 0.0
    %304 = vmatpush1.msra.mxu0 %v272
    %305 = vmatprep.subr.mxu0 0.0
    %306 = vmatpush1.msra.mxu0 %v271
    %307 = vmatprep.subr.mxu0 0.0
    %308 = vmatpush2.msra.mxu0 0.0
    %309 = vmatprep.subr.mxu0 0.0
    %310 = vmatpush2.msra.mxu0 0.0
    %311 = vmatprep.subr.mxu0 0.0
    %312 = vmatpush2.msra.mxu0 0.0
    %313 = vmatprep.subr.mxu0 0.0
    %314 = vmatpush2.msra.mxu0 0.0
    %315 = vmatprep.subr.mxu0 0.0
    %316 = vmatpush2.msra.mxu0 0.0
    %317 = vmatprep.subr.mxu0 0.0
    %318 = vmatpush2.msra.mxu0 0.0
    %319 = vmatprep.subr.mxu0 0.0
    %320 = vmatpush2.msra.mxu0 0.0
    %321 = vmatprep.subr.mxu0 0.0
    %322 = vmatpush2.msra.mxu0 0.0
    %323 = vmatprep.subr.mxu0 0.0
    %324 = vmatpush2.msra.mxu0 0.0
    %325 = vmatprep.subr.mxu0 0.0
    %326 = vmatpush2.msra.mxu0 0.0
    %327 = vmatprep.subr.mxu0 0.0
    %328 = vmatpush2.msra.mxu0 0.0
    %329 = vmatprep.subr.mxu0 0.0
    %330 = vmatpush2.msra.mxu0 0.0
    %331 = vmatprep.subr.mxu0 0.0
    %332 = vmatpush2.msra.mxu0 0.0
    %333 = vmatprep.subr.mxu0 0.0
    %334 = vmatpush2.msra.mxu0 0.0
    %335 = vmatprep.subr.mxu0 0.0
    %336 = vmatpush2.msra.mxu0 0.0
    %337 = vmatprep.subr.mxu0 0.0
    %338 = vmatpush2.msra.mxu0 0.0
    %339 = vmatprep.mubr.f32.mxu0 0.0
    %340 = vmatmul.mubr.f32.gmra.mxu0 %v191
    %v341 = vpop.f32.mrf.mxu0
    %v342 = vadd.f32 0.0, %v341
    %v343 = vpop.f32.mrf.mxu0
    %344 = vmatprep.mubr.f32.mxu0 0.0
    %345 = vmatmul.mubr.f32.gmra.mxu0 %v194
    %v346 = vpop.f32.mrf.mxu0
    %v347 = vadd.f32 0.0, %v346
    %v348 = vpop.f32.mrf.mxu0
    %349 = vdwg.mxu0
    %v352 = vunpack.c.l.s4 1966171168
    %v353 = vunpack.c.0.s8 %v352
    %v354 = vlaneseq
    %v355 = vshrl.u32 %v354, 7
    %v356 = vsub.s32 %v353, %v355
    %v357 = vrot.slane %v185, %v356
    %v358 = vcombine.high %v357, %v357
    %v360 = vunpack.c.l.s4 1966171168
    %v361 = vunpack.c.0.s8 %v360
    %v362 = vlaneseq
    %v363 = vshrl.u32 %v362, 7
    %v364 = vsub.s32 %v361, %v363
    %v365 = vrot.slane %v357, %v364
    %v367 = vunpack.c.l.s4 1966171168
    %v368 = vunpack.c.0.s8 %v367
    %v369 = vlaneseq
    %v370 = vshrl.u32 %v369, 7
    %v371 = vsub.s32 %v368, %v370
    %v372 = vrot.slane %v358, %v371
    %v373 = vlaneseq
    %v374 = vshrl.u32 %v373, 7
    %v375 = vsub.s32 0, %v374
    %v376 = vrot.slane %v365, %v375
    %v377 = vlaneseq
    %v378 = vshrl.u32 %v377, 7
    %v379 = vsub.s32 0, %v378
    %v380 = vrot.slane %v372, %v379
    %v383 = vmul.f32 %v263, %v376
    %v384 = vmul.f32 %v268, %v380
    %vm385 = vcmask 130048
    %v386 = vsel %vm385, %v383, 0.0
    %387 = vadd.xlane.f32.xlu0 %v386
    %v388 = vpop.xlane.xlu0 %387
    %v389 = vsel %vm385, %v384, 0.0
    %390 = vadd.xlane.f32.xlu0 %v389
    %v391 = vpop.xlane.xlu0 %390
    %394 = vrot.lane.b32.xlu0 %v383, 112
    %v395 = vpop.permute.xlu0 %394
    %396 = vrot.lane.b32.xlu0 %v384, 112
    %v397 = vpop.permute.xlu0 %396
    %v400 = vsel %vm385, %v395, 0.0
    %401 = vadd.xlane.f32.xlu0 %v400
    %v402 = vpop.xlane.xlu0 %401
    %v403 = vsel %vm385, %v397, 0.0
    %404 = vadd.xlane.f32.xlu0 %v403
    %v405 = vpop.xlane.xlu0 %404
    %v406 = vlaneseq
    %v407 = vand.u32 %v406, 127
    %412 = vset.pattern.permute.xlu0 0
    %413 = vperm.xlu0 %412, %v388
    %v414 = vpop.permute.xlu0 %413
    %415 = vset.pattern.permute.xlu0 0
    %416 = vperm.xlu0 %415, %v391
    %v417 = vpop.permute.xlu0 %416
    %418 = vset.pattern.permute.xlu0 0
    %419 = vperm.xlu0 %418, %v402
    %v420 = vpop.permute.xlu0 %419
    %421 = vset.pattern.permute.xlu0 0
    %422 = vperm.xlu0 %421, %v405
    %v423 = vpop.permute.xlu0 %422
    %v424 = vlaneseq
    %v425 = vshrl.u32 %v424, 7
    %v426 = vsub.s32 %v407, %v425
    %v427 = vrot.slane %v414, %v426
    %v428 = vlaneseq
    %v429 = vshrl.u32 %v428, 7
    %v430 = vsub.s32 %v407, %v429
    %v431 = vrot.slane %v417, %v430
    %v432 = vlaneseq
    %v433 = vshrl.u32 %v432, 7
    %v434 = vsub.s32 %v407, %v433
    %v435 = vrot.slane %v420, %v434
    %v436 = vlaneseq
    %v437 = vshrl.u32 %v436, 7
    %v438 = vsub.s32 %v407, %v437
    %v439 = vrot.slane %v423, %v438
    %vm440 = vcmask 1041409
    %v441 = vsel %vm440, %v431, %v427
    %v442 = vsel %vm440, %v439, %v435
    %vm445 = vcmask 58368
    %v446 = vsel %vm445, %v441, -inf
    %447 = vmax.xlane.f32.xlu0 %v446
    %v448 = vpop.xlane.xlu0 %447
    %v449 = vsel %vm445, %v442, -inf
    %450 = vmax.xlane.f32.xlu0 %v449
    %v451 = vpop.xlane.xlu0 %450
    %v454 = vlaneseq
    %v455 = vshrl.u32 %v454, 7
    %v456 = vsub.s32 0, %v455
    %v457 = vrot.slane %v448, %v456
    %v458 = vlaneseq
    %v459 = vshrl.u32 %v458, 7
    %v460 = vsub.s32 1, %v459
    %v461 = vrot.slane %v448, %v460
    %v462 = vlaneseq
    %v463 = vshrl.u32 %v462, 7
    %v464 = vsub.s32 0, %v463
    %v465 = vrot.slane %v451, %v464
    %v466 = vlaneseq
    %v467 = vshrl.u32 %v466, 7
    %v468 = vsub.s32 1, %v467
    %v469 = vrot.slane %v451, %v468
    %vm474 = vcmp.eq.f32.partialorder %v388, %v457
    %vm475 = vcmp.eq.f32.partialorder %v391, %v461
    %vm476 = vcmp.eq.f32.partialorder %v402, %v465
    %vm477 = vcmp.eq.f32.partialorder %v405, %v469
    %479 = vbcast.lane.b32.xlu0 %v407, 256
    %v480 = vpop.permute.xlu0 %479
    %v481 = vsel %vm474, %v480, 8
    %v482 = vsel %vm475, %v480, 8
    %v483 = vsel %vm476, %v480, 8
    %v484 = vsel %vm477, %v480, 8
    %485 = vset.pattern.permute.xlu0 0
    %486 = vperm.xlu0 %485, %v481
    %v487 = vpop.permute.xlu0 %486
    %488 = vset.pattern.permute.xlu0 0
    %489 = vperm.xlu0 %488, %v482
    %v490 = vpop.permute.xlu0 %489
    %491 = vset.pattern.permute.xlu0 0
    %492 = vperm.xlu0 %491, %v483
    %v493 = vpop.permute.xlu0 %492
    %494 = vset.pattern.permute.xlu0 0
    %495 = vperm.xlu0 %494, %v484
    %v496 = vpop.permute.xlu0 %495
    %v497 = vlaneseq
    %v498 = vshrl.u32 %v497, 7
    %v499 = vsub.s32 %v407, %v498
    %v500 = vrot.slane %v487, %v499
    %v501 = vlaneseq
    %v502 = vshrl.u32 %v501, 7
    %v503 = vsub.s32 %v407, %v502
    %v504 = vrot.slane %v490, %v503
    %v505 = vlaneseq
    %v506 = vshrl.u32 %v505, 7
    %v507 = vsub.s32 %v407, %v506
    %v508 = vrot.slane %v493, %v507
    %v509 = vlaneseq
    %v510 = vshrl.u32 %v509, 7
    %v511 = vsub.s32 %v407, %v510
    %v512 = vrot.slane %v496, %v511
    %v513 = vsel %vm440, %v504, %v500
    %v514 = vsel %vm440, %v512, %v508
    %v515 = vsel %vm445, %v513, 2147483647
    %v516 = vand.u32 %v515, 65535
    %v517 = vshra.s32 %v515, 16
    %v518 = vcvt.s32.f32 %v516
    %v519 = vcvt.s32.f32 %v517
    %520 = vmin.xlane.f32.xlu0 %v519
    %v521 = vpop.xlane.xlu0 %520
    %vm522 = vcmp.eq.f32.partialorder %v519, %v521
    %v523 = vsel %vm522, %v518, inf
    %524 = vmin.xlane.f32.xlu0 %v523
    %v525 = vpop.xlane.xlu0 %524
    %v526 = vcvt.f32.s32 %v525
    %v527 = vcvt.f32.s32 %v521
    %v528 = vshll.u32 %v527, 16
    %v529 = vadd.s32 %v528, %v526
    %v530 = vsel %vm445, %v514, 2147483647
    %v531 = vand.u32 %v530, 65535
    %v532 = vshra.s32 %v530, 16
    %v533 = vcvt.s32.f32 %v531
    %v534 = vcvt.s32.f32 %v532
    %535 = vmin.xlane.f32.xlu0 %v534
    %v536 = vpop.xlane.xlu0 %535
    %vm537 = vcmp.eq.f32.partialorder %v534, %v536
    %v538 = vsel %vm537, %v533, inf
    %539 = vmin.xlane.f32.xlu0 %v538
    %v540 = vpop.xlane.xlu0 %539
    %v541 = vcvt.f32.s32 %v540
    %v542 = vcvt.f32.s32 %v536
    %v543 = vshll.u32 %v542, 16
    %v544 = vadd.s32 %v543, %v541
    %vm545 = vcmp.eq.s32.totalorder %v407, %v529
    %vm546 = vcmp.eq.s32.totalorder %v407, %v544
    %v547 = vsel %vm545, -1e+30, %v441
    %v548 = vsel %vm546, -1e+30, %v442
    %v549 = vsel %vm445, %v547, -inf
    %550 = vmax.xlane.f32.xlu0 %v549
    %v551 = vpop.xlane.xlu0 %550
    %v552 = vsel %vm445, %v548, -inf
    %553 = vmax.xlane.f32.xlu0 %v552
    %v554 = vpop.xlane.xlu0 %553
    %vm555 = vcmp.eq.f32.partialorder %v547, %v551
    %vm556 = vcmp.eq.f32.partialorder %v548, %v554
    %v557 = vsel %vm555, %v407, 8
    %v558 = vsel %vm556, %v407, 8
    %v559 = vsel %vm445, %v557, 2147483647
    %v560 = vand.u32 %v559, 65535
    %v561 = vshra.s32 %v559, 16
    %v562 = vcvt.s32.f32 %v560
    %v563 = vcvt.s32.f32 %v561
    %564 = vmin.xlane.f32.xlu0 %v563
    %v565 = vpop.xlane.xlu0 %564
    %vm566 = vcmp.eq.f32.partialorder %v563, %v565
    %v567 = vsel %vm566, %v562, inf
    %568 = vmin.xlane.f32.xlu0 %v567
    %v569 = vpop.xlane.xlu0 %568
    %v570 = vcvt.f32.s32 %v569
    %v571 = vcvt.f32.s32 %v565
    %v572 = vshll.u32 %v571, 16
    %v573 = vadd.s32 %v572, %v570
    %v574 = vsel %vm445, %v558, 2147483647
    %v575 = vand.u32 %v574, 65535
    %v576 = vshra.s32 %v574, 16
    %v577 = vcvt.s32.f32 %v575
    %v578 = vcvt.s32.f32 %v576
    %579 = vmin.xlane.f32.xlu0 %v578
    %v580 = vpop.xlane.xlu0 %579
    %vm581 = vcmp.eq.f32.partialorder %v578, %v580
    %v582 = vsel %vm581, %v577, inf
    %583 = vmin.xlane.f32.xlu0 %v582
    %v584 = vpop.xlane.xlu0 %583
    %v585 = vcvt.f32.s32 %v584
    %v586 = vcvt.f32.s32 %v580
    %v587 = vshll.u32 %v586, 16
    %v588 = vadd.s32 %v587, %v585
    %vm589 = vcmp.eq.s32.totalorder %v407, %v573
    %vm590 = vcmp.eq.s32.totalorder %v407, %v588
    %vm591 = vmor %vm545, %vm589
    %vm592 = vmor %vm546, %vm590
    %v593 = vsel %vm589, -1e+30, %v547
    %v594 = vsel %vm590, -1e+30, %v548
    %v595 = vsel %vm445, %v593, -inf
    %596 = vmax.xlane.f32.xlu0 %v595
    %v597 = vpop.xlane.xlu0 %596
    %v598 = vsel %vm445, %v594, -inf
    %599 = vmax.xlane.f32.xlu0 %v598
    %v600 = vpop.xlane.xlu0 %599
    %vm601 = vcmp.eq.f32.partialorder %v593, %v597
    %vm602 = vcmp.eq.f32.partialorder %v594, %v600
    %v603 = vsel %vm601, %v407, 8
    %v604 = vsel %vm602, %v407, 8
    %v605 = vsel %vm445, %v603, 2147483647
    %v606 = vand.u32 %v605, 65535
    %v607 = vshra.s32 %v605, 16
    %v608 = vcvt.s32.f32 %v606
    %v609 = vcvt.s32.f32 %v607
    %610 = vmin.xlane.f32.xlu0 %v609
    %v611 = vpop.xlane.xlu0 %610
    %vm612 = vcmp.eq.f32.partialorder %v609, %v611
    %v613 = vsel %vm612, %v608, inf
    %614 = vmin.xlane.f32.xlu0 %v613
    %v615 = vpop.xlane.xlu0 %614
    %v616 = vcvt.f32.s32 %v615
    %v617 = vcvt.f32.s32 %v611
    %v618 = vshll.u32 %v617, 16
    %v619 = vadd.s32 %v618, %v616
    %v620 = vsel %vm445, %v604, 2147483647
    %v621 = vand.u32 %v620, 65535
    %v622 = vshra.s32 %v620, 16
    %v623 = vcvt.s32.f32 %v621
    %v624 = vcvt.s32.f32 %v622
    %625 = vmin.xlane.f32.xlu0 %v624
    %v626 = vpop.xlane.xlu0 %625
    %vm627 = vcmp.eq.f32.partialorder %v624, %v626
    %v628 = vsel %vm627, %v623, inf
    %629 = vmin.xlane.f32.xlu0 %v628
    %v630 = vpop.xlane.xlu0 %629
    %v631 = vcvt.f32.s32 %v630
    %v632 = vcvt.f32.s32 %v626
    %v633 = vshll.u32 %v632, 16
    %v634 = vadd.s32 %v633, %v631
    %vm635 = vcmp.eq.s32.totalorder %v407, %v619
    %vm636 = vcmp.eq.s32.totalorder %v407, %v634
    %vm637 = vmor %vm591, %vm635
    %vm638 = vmor %vm592, %vm636
    %v639 = vsel %vm635, -1e+30, %v593
    %v640 = vsel %vm636, -1e+30, %v594
    %v641 = vsel %vm445, %v639, -inf
    %642 = vmax.xlane.f32.xlu0 %v641
    %v643 = vpop.xlane.xlu0 %642
    %v644 = vsel %vm445, %v640, -inf
    %645 = vmax.xlane.f32.xlu0 %v644
    %v646 = vpop.xlane.xlu0 %645
    %vm647 = vcmp.eq.f32.partialorder %v639, %v643
    %vm648 = vcmp.eq.f32.partialorder %v640, %v646
    %v649 = vsel %vm647, %v407, 8
    %v650 = vsel %vm648, %v407, 8
    %v651 = vsel %vm445, %v649, 2147483647
    %v652 = vand.u32 %v651, 65535
    %v653 = vshra.s32 %v651, 16
    %v654 = vcvt.s32.f32 %v652
    %v655 = vcvt.s32.f32 %v653
    %656 = vmin.xlane.f32.xlu0 %v655
    %v657 = vpop.xlane.xlu0 %656
    %vm658 = vcmp.eq.f32.partialorder %v655, %v657
    %v659 = vsel %vm658, %v654, inf
    %660 = vmin.xlane.f32.xlu0 %v659
    %v661 = vpop.xlane.xlu0 %660
    %v662 = vcvt.f32.s32 %v661
    %v663 = vcvt.f32.s32 %v657
    %v664 = vshll.u32 %v663, 16
    %v665 = vadd.s32 %v664, %v662
    %v666 = vsel %vm445, %v650, 2147483647
    %v667 = vand.u32 %v666, 65535
    %v668 = vshra.s32 %v666, 16
    %v669 = vcvt.s32.f32 %v667
    %v670 = vcvt.s32.f32 %v668
    %671 = vmin.xlane.f32.xlu0 %v670
    %v672 = vpop.xlane.xlu0 %671
    %vm673 = vcmp.eq.f32.partialorder %v670, %v672
    %v674 = vsel %vm673, %v669, inf
    %675 = vmin.xlane.f32.xlu0 %v674
    %v676 = vpop.xlane.xlu0 %675
    %v677 = vcvt.f32.s32 %v676
    %v678 = vcvt.f32.s32 %v672
    %v679 = vshll.u32 %v678, 16
    %v680 = vadd.s32 %v679, %v677
    %vm681 = vcmp.eq.s32.totalorder %v407, %v665
    %vm682 = vcmp.eq.s32.totalorder %v407, %v680
    %vm683 = vmor %vm637, %vm681
    %vm684 = vmor %vm638, %vm682
    %v685 = vsel %vm683, %v441, -1e+30
    %v686 = vsel %vm684, %v442, -1e+30
    %v687 = vsel %vm445, %v685, -inf
    %688 = vmax.xlane.f32.xlu0 %v687
    %v689 = vpop.xlane.xlu0 %688
    %v690 = vsel %vm445, %v686, -inf
    %691 = vmax.xlane.f32.xlu0 %v690
    %v692 = vpop.xlane.xlu0 %691
    %v693 = vsub.f32 %v685, %v689
    %v694 = vsub.f32 %v686, %v692
    %v695 = vmul.f32 %v693, 1.442695
    %v696 = vpow.pop %v695
    %v697 = vmul.f32 %v694, 1.442695
    %v698 = vpow.pop %v697
    %v699 = vsel %vm445, %v696, 0.0
    %700 = vadd.xlane.f32.xlu0 %v699
    %v701 = vpop.xlane.xlu0 %700
    %v702 = vsel %vm445, %v698, 0.0
    %703 = vadd.xlane.f32.xlu0 %v702
    %v704 = vpop.xlane.xlu0 %703
    %v705 = vrcp.pop %v701
    %v706 = vrcp.pop %v704
    %v707 = vmul.f32 %v696, %v705
    %v708 = vmul.f32 %v698, %v706
    %v709 = vlaneseq
    %v710 = vshrl.u32 %v709, 7
    %v711 = vsub.s32 0, %v710
    %v712 = vrot.slane %v707, %v711
    %714 = vbcast.lane.b32.xlu0 %v712, 256
    %v715 = vpop.permute.xlu0 %714
    %v716 = vlaneseq
    %v717 = vshrl.u32 %v716, 7
    %v718 = vsub.s32 1, %v717
    %v719 = vrot.slane %v707, %v718
    %721 = vbcast.lane.b32.xlu0 %v719, 256
    %v722 = vpop.permute.xlu0 %721
    %v723 = vmul.f32 %v342, %v715
    %v724 = vmul.f32 %v347, %v722
    %v725 = vsel %vm385, %v723, 0.0
    %v726 = vrot.slane %v725, 4
    %v727 = vadd.f32 %v725, %v726
    %v728 = vrot.slane %v727, 2
    %v729 = vadd.f32 %v727, %v728
    %v730 = vrot.slane %v729, 1
    %v731 = vadd.f32 %v729, %v730
    %v732 = vsel %vm385, %v724, 0.0
    %v733 = vrot.slane %v732, 4
    %v734 = vadd.f32 %v732, %v733
    %v735 = vrot.slane %v734, 2
    %v736 = vadd.f32 %v734, %v735
    %v737 = vrot.slane %v736, 1
    %v738 = vadd.f32 %v736, %v737
    %v739 = vlaneseq
    %v740 = vshrl.u32 %v739, 7
    %v741 = vsub.s32 0, %v740
    %v742 = vrot.slane %v708, %v741
    %744 = vbcast.lane.b32.xlu0 %v742, 256
    %v745 = vpop.permute.xlu0 %744
    %v746 = vlaneseq
    %v747 = vshrl.u32 %v746, 7
    %v748 = vsub.s32 1, %v747
    %v749 = vrot.slane %v708, %v748
    %751 = vbcast.lane.b32.xlu0 %v749, 256
    %v752 = vpop.permute.xlu0 %751
    %v753 = vmul.f32 %v342, %v745
    %v754 = vmul.f32 %v347, %v752
    %vm755 = vcmask 261248
    %v756 = vsel %vm755, %v753, 0.0
    %v757 = vrot.slane %v756, 4
    %v758 = vadd.f32 %v756, %v757
    %v759 = vrot.slane %v758, 2
    %v760 = vadd.f32 %v758, %v759
    %v761 = vrot.slane %v760, 1
    %v762 = vadd.f32 %v760, %v761
    %v763 = vsel %vm755, %v754, 0.0
    %v764 = vrot.slane %v763, 4
    %v765 = vadd.f32 %v763, %v764
    %v766 = vrot.slane %v765, 2
    %v767 = vadd.f32 %v765, %v766
    %v768 = vrot.slane %v767, 1
    %v769 = vadd.f32 %v767, %v768
    %v772 = vsel %vm440, %v738, %v731
    %v776 = vsel %vm440, %v769, %v762
    %v778 = vsel %vm385, %v772, %v776
    %v779 = vld [vmem:[#allocation11] sm:$0xff]
    %v780 = vld [vmem:[#allocation11 + $0x8] sm:$0xff]
    %v781 = vld [vmem:[#allocation11 + $0x10] sm:$0xff]
    %v782 = vld [vmem:[#allocation11 + $0x18] sm:$0xff]
    %v784 = vsel %vm111, %v778, 0
    %786 = vmatprep.subr.mxu0 0.0
    %787 = vmatpush1.msra.mxu0 0.0
    %788 = vmatprep.subr.mxu0 0.0
    %789 = vmatpush1.msra.mxu0 0.0
    %790 = vmatprep.subr.mxu0 0.0
    %791 = vmatpush1.msra.mxu0 0.0
    %792 = vmatprep.subr.mxu0 0.0
    %793 = vmatpush1.msra.mxu0 0.0
    %794 = vmatprep.subr.mxu0 0.0
    %795 = vmatpush1.msra.mxu0 0.0
    %796 = vmatprep.subr.mxu0 0.0
    %797 = vmatpush1.msra.mxu0 0.0
    %798 = vmatprep.subr.mxu0 0.0
    %799 = vmatpush1.msra.mxu0 0.0
    %800 = vmatprep.subr.mxu0 0.0
    %801 = vmatpush1.msra.mxu0 0.0
    %802 = vmatprep.subr.mxu0 0.0
    %803 = vmatpush1.msra.mxu0 0.0
    %804 = vmatprep.subr.mxu0 0.0
    %805 = vmatpush1.msra.mxu0 0.0
    %806 = vmatprep.subr.mxu0 0.0
    %807 = vmatpush1.msra.mxu0 0.0
    %808 = vmatprep.subr.mxu0 0.0
    %809 = vmatpush1.msra.mxu0 0.0
    %810 = vmatprep.subr.mxu0 0.0
    %811 = vmatpush1.msra.mxu0 %v782
    %812 = vmatprep.subr.mxu0 0.0
    %813 = vmatpush1.msra.mxu0 %v781
    %814 = vmatprep.subr.mxu0 0.0
    %815 = vmatpush1.msra.mxu0 %v780
    %816 = vmatprep.subr.mxu0 0.0
    %817 = vmatpush1.msra.mxu0 %v779
    %818 = vmatprep.subr.mxu0 0.0
    %819 = vmatpush2.msra.mxu0 0.0
    %820 = vmatprep.subr.mxu0 0.0
    %821 = vmatpush2.msra.mxu0 0.0
    %822 = vmatprep.subr.mxu0 0.0
    %823 = vmatpush2.msra.mxu0 0.0
    %824 = vmatprep.subr.mxu0 0.0
    %825 = vmatpush2.msra.mxu0 0.0
    %826 = vmatprep.subr.mxu0 0.0
    %827 = vmatpush2.msra.mxu0 0.0
    %828 = vmatprep.subr.mxu0 0.0
    %829 = vmatpush2.msra.mxu0 0.0
    %830 = vmatprep.subr.mxu0 0.0
    %831 = vmatpush2.msra.mxu0 0.0
    %832 = vmatprep.subr.mxu0 0.0
    %833 = vmatpush2.msra.mxu0 0.0
    %834 = vmatprep.subr.mxu0 0.0
    %835 = vmatpush2.msra.mxu0 0.0
    %836 = vmatprep.subr.mxu0 0.0
    %837 = vmatpush2.msra.mxu0 0.0
    %838 = vmatprep.subr.mxu0 0.0
    %839 = vmatpush2.msra.mxu0 0.0
    %840 = vmatprep.subr.mxu0 0.0
    %841 = vmatpush2.msra.mxu0 0.0
    %842 = vmatprep.subr.mxu0 0.0
    %843 = vmatpush2.msra.mxu0 0.0
    %844 = vmatprep.subr.mxu0 0.0
    %845 = vmatpush2.msra.mxu0 0.0
    %846 = vmatprep.subr.mxu0 0.0
    %847 = vmatpush2.msra.mxu0 0.0
    %848 = vmatprep.subr.mxu0 0.0
    %849 = vmatpush2.msra.mxu0 0.0
    %850 = vmatprep.mubr.f32.mxu0 0.0
    %851 = vmatmul.mubr.f32.gmra.mxu0 %v784
    %v852 = vpop.f32.mrf.mxu0
    %v853 = vadd.f32 0.0, %v852
    %v854 = vpop.f32.mrf.mxu0
    %855 = vdwg.mxu0
    %vm856 = vcmask 254976
    %857 = vst.msk [vmem:[#allocation13] sm:$0x3] %vm856, %v853
    // Predicated region
    $region50: #{tpu_custom_call.1} parent=1 // pred_check
      _
    $region51: #{tpu_custom_call.1} parent=1 // pred_check_branch
      %859 = sbr.rel (0) target = $region53
    $region52: #{tpu_custom_call.1} parent=1 // pred_region
      %s861 = ssub.s32 32, 32
      %862 = vsyncadd [#allocation4], %s861
      %s864 = sshll.u32 [#allocation13], 4
      %s865 = int_to_ptr.vmem [resolvable:$true] %s864
      %867 = dma.vmem_to_hbm [thread:$0]  %s865, 32, %s6, [#allocation4]
    $region53: #{tpu_custom_call.1} parent=1 // pred_fallthru
      _
    // Predicated region
    $region54: #{tpu_custom_call.1} parent=1 // pred_check
      _
    $region55: #{tpu_custom_call.1} parent=1 // pred_check_branch
      %869 = sbr.rel (0) target = $region57
    $region56: #{tpu_custom_call.1} parent=1 // pred_region
      %870 = dma.done [#allocation4], 32
    $region57: #{tpu_custom_call.1} parent=1 // pred_fallthru
      _
    %871 = vsyncpa [#allocation3], 1
    %872 = vsyncpa [#allocation6], 1
    %873 = vsyncpa [#allocation9], 1
    %874 = vsyncpa [#allocation12], 1
    %875 = vsyncpa [#allocation4], 1

</llo_original>
